<compile_context>
chip_gen: v7x
topology: tpu7x:2x2x1
jax: 0.10.0
libtpu: 0.0.40
codegen_flags: <defaults>
</compile_context>

<pallas_src>
import jax
import jax.numpy as jnp
import numpy as np
from jax.experimental import pallas as pl
from jax.experimental.pallas import tpu as pltpu


# ----------------------------------------------------------------------------
# Stage 1: GTConv channel combine (one pass over A), f32 math, bf16 output.
# ----------------------------------------------------------------------------
def combine_kernel(f1_ref, f2_ref, a_ref, ac_ref, bc_ref):
    """One (row_tile, col_tile) grid step.

    f1_ref, f2_ref : (O, C) f32 in SMEM (softmaxed conv filters)
    a_ref          : (C, tr, tc) f32 in VMEM  (A[:, r_tile, c_tile])
    ac_ref, bc_ref : (O, tr, tc) bf16 in VMEM (combined LHS / RHS tiles)
    """
    c_in = a_ref.shape[0]
    o_out = ac_ref.shape[0]
    for o in range(o_out):
        a_acc = a_ref[0] * f1_ref[o, 0]
        b_acc = a_ref[0] * f2_ref[o, 0]
        for c in range(1, c_in):
            a_acc = a_acc + a_ref[c] * f1_ref[o, c]
            b_acc = b_acc + a_ref[c] * f2_ref[o, c]
        # Single bf16 store per output tile (only ever an MXU operand).
        ac_ref[o] = a_acc.astype(jnp.bfloat16)
        bc_ref[o] = b_acc.astype(jnp.bfloat16)


# ----------------------------------------------------------------------------
# Stage 2: per-output-channel tiled bf16 matmul, f32 accumulate into output.
# ----------------------------------------------------------------------------
def matmul_kernel(ac_ref, bc_ref, h_ref):
    """One (out_channel, m_tile, n_tile, k_tile) grid step.

    ac_ref : (tm, tk) bf16 in VMEM  (A_comb[i, m_tile, k_tile])
    bc_ref : (tk, tn) bf16 in VMEM  (B_comb[i, k_tile, n_tile])
    h_ref  : (tm, tn) f32  in VMEM  (output tile; VMEM-resident across k)
    """
    k = pl.program_id(3)

    @pl.when(k == 0)
    def _():
        h_ref[...] = jnp.zeros_like(h_ref)

    h_ref[...] += jnp.dot(ac_ref[...], bc_ref[...],
                          preferred_element_type=jnp.float32)


def _pick_tile(n, candidates=(512, 256, 128)):
    # Largest aligned tile that divides n (n is pre-padded to a multiple of 128).
    for t in candidates:
        if n % t == 0:
            return t
    return n  # genuinely tiny N only


def gt_layer_first(A_dense, weight1, weight2):
    """GTLayer(first=True).forward, dense-equivalent.

    A_dense : (in_channels, N, N) f32
    weight1 : (out_channels, in_channels) f32   (conv1.weight)
    weight2 : (out_channels, in_channels) f32   (conv2.weight)
    returns (H, [filter1, filter2]) with H : (out_channels, N, N) f32
    """
    in_channels, N, _ = A_dense.shape
    out_channels = weight1.shape[0]

    # Parameter glue (tiny): softmax over in_channels == F.softmax(w, dim=1).
    filt1 = jax.nn.softmax(weight1.astype(jnp.float32), axis=1)
    filt2 = jax.nn.softmax(weight2.astype(jnp.float32), axis=1)

    A_dense = A_dense.astype(jnp.float32)

    # Pad N to a multiple of 128 so all output tiles are lane-dense (no masked
    # partial stores); zero padding is exact for both the combine and matmul.
    Np = max(128, ((N + 127) // 128) * 128)
    if Np != N:
        A_dense = jnp.pad(A_dense, ((0, 0), (0, Np - N), (0, Np - N)))

    vmem_limit = 48 * 1024 * 1024  # safe on v5e/v6e and under v7x's 64 MiB

    # ---------------- Stage 1: channel combine -> bf16 operands --------------
    tc = _pick_tile(Np)
    cost_combine = pl.CostEstimate(
        flops=2 * 2 * out_channels * in_channels * Np * Np,
        transcendentals=0,
        bytes_accessed=4 * in_channels * Np * Np
                       + 2 * 2 * out_channels * Np * Np,
    )
    A_comb, B_comb = pl.pallas_call(
        combine_kernel,
        out_shape=(jax.ShapeDtypeStruct((out_channels, Np, Np), jnp.bfloat16),
                   jax.ShapeDtypeStruct((out_channels, Np, Np), jnp.bfloat16)),
        grid=(Np // tc, Np // tc),
        in_specs=[
            pl.BlockSpec(memory_space=pltpu.MemorySpace.SMEM),   # filter1
            pl.BlockSpec(memory_space=pltpu.MemorySpace.SMEM),   # filter2
            pl.BlockSpec((in_channels, tc, tc), lambda r, c: (0, r, c)),
        ],
        out_specs=(
            pl.BlockSpec((out_channels, tc, tc), lambda r, c: (0, r, c)),
            pl.BlockSpec((out_channels, tc, tc), lambda r, c: (0, r, c)),
        ),
        compiler_params=pltpu.CompilerParams(
            dimension_semantics=("parallel", "parallel"),
            vmem_limit_bytes=vmem_limit),
        cost_estimate=cost_combine,
    )(filt1, filt2, A_dense)

    # ---------------- Stage 2: tiled bf16 matmul per output channel ----------
    t = _pick_tile(Np)
    tm = tn = tk = t
    mt, nt, kt = Np // tm, Np // tn, Np // tk

    cost_mm = pl.CostEstimate(
        flops=out_channels * 2 * Np ** 3,
        transcendentals=0,
        bytes_accessed=out_channels * (2 * Np * Np * nt      # LHS bf16 re-reads
                                       + 2 * Np * Np * mt    # RHS bf16 re-reads
                                       + 4 * Np * Np),       # f32 output
    )

    H = pl.pallas_call(
        matmul_kernel,
        out_shape=jax.ShapeDtypeStruct((out_channels, Np, Np), jnp.float32),
        grid=(out_channels, mt, nt, kt),
        in_specs=[
            pl.BlockSpec((None, tm, tk), lambda i, m, n, k: (i, m, k)),
            pl.BlockSpec((None, tk, tn), lambda i, m, n, k: (i, k, n)),
        ],
        out_specs=pl.BlockSpec((None, tm, tn), lambda i, m, n, k: (i, m, n)),
        compiler_params=pltpu.CompilerParams(
            dimension_semantics=("parallel", "parallel", "parallel", "arbitrary"),
            vmem_limit_bytes=vmem_limit),
        cost_estimate=cost_mm,
    )(A_comb, B_comb)

    if Np != N:
        H = H[:, :N, :N]

    return H, [filt1, filt2]


if __name__ == "__main__":
    in_channels = 4      # number of edge types / adjacency matrices
    out_channels = 2     # GT conv output channels
    num_nodes = 128

    key = jax.random.PRNGKey(0)
    k_a, k_m, k_w1, k_w2 = jax.random.split(key, 4)

    # Dense sparse-like adjacency stack (random values, ~10% nonzero).
    vals = jax.random.uniform(k_a, (in_channels, num_nodes, num_nodes), jnp.float32)
    mask = jax.random.bernoulli(k_m, 0.1, (in_channels, num_nodes, num_nodes))
    A_dense = vals * mask.astype(jnp.float32)

    # Module init is constant ones; use deterministic random weights of the same
    # shape (out_channels, in_channels) so the softmax is non-degenerate.
    weight1 = 1.0 + 0.5 * jax.random.normal(k_w1, (out_channels, in_channels), jnp.float32)
    weight2 = 1.0 + 0.5 * jax.random.normal(k_w2, (out_channels, in_channels), jnp.float32)

    H, W = gt_layer_first(A_dense, weight1, weight2)
    H = jax.block_until_ready(H)

    # Pure-JAX f32 reference of the same semantics.
    f1 = jax.nn.softmax(weight1, axis=1)
    f2 = jax.nn.softmax(weight2, axis=1)
    A_comb = jnp.einsum("oc,cnm->onm", f1, A_dense)
    B_comb = jnp.einsum("oc,cnm->onm", f2, A_dense)
    H_ref = jnp.einsum("onk,okm->onm", A_comb, B_comb)

    # Tolerance relaxed vs f32 reference: MXU operands are bf16 (channel sum is
    # computed in f32 before the cast; f32 accumulation), ~0.4% relative error.
    np.testing.assert_allclose(np.asarray(H), np.asarray(H_ref), rtol=2e-2, atol=2e-2)
    print("KERNEL_OK")
</pallas_src>

<mosaic_0001>
module attributes {stable_mosaic.version = 11 : i64} {
  func.func @combine_kernel(%arg0: i32, %arg1: i32, %arg2: memref<2x4xf32, #tpu.memory_space<smem>>, %arg3: memref<2x4xf32, #tpu.memory_space<smem>>, %arg4: memref<4x128x128xf32, #tpu.memory_space<vmem>>, %arg5: memref<2x128x128xbf16, #tpu.memory_space<vmem>>, %arg6: memref<2x128x128xbf16, #tpu.memory_space<vmem>>) attributes {dimension_semantics = [#tpu.dimension_semantics<parallel>, #tpu.dimension_semantics<parallel>], iteration_bounds = array<i64: 1, 1>, scalar_prefetch = 0 : i64, scratch_operands = 0 : i64, tpu.core_type = #tpu.core_type<tc>, window_params = [{transform_indices = @transform_0, window_bounds = array<i64: 2, 4>}, {transform_indices = @transform_1, window_bounds = array<i64: 2, 4>}, {transform_indices = @transform_2, window_bounds = array<i64: 4, 128, 128>}, {transform_indices = @transform_3, window_bounds = array<i64: 2, 128, 128>}, {transform_indices = @transform_4, window_bounds = array<i64: 2, 128, 128>}]} {
    %c0 = arith.constant 0 : index
    %c0_0 = arith.constant 0 : index
    %c0_1 = arith.constant 0 : index
    %0 = vector.load %arg4[%c0, %c0_0, %c0_1] : memref<4x128x128xf32, #tpu.memory_space<vmem>>, vector<1x128x128xf32>
    %1 = vector.shape_cast %0 : vector<1x128x128xf32> to vector<128x128xf32>
    %c0_2 = arith.constant 0 : index
    %c0_3 = arith.constant 0 : index
    %2 = memref.load %arg2[%c0_2, %c0_3] : memref<2x4xf32, #tpu.memory_space<smem>>
    %3 = vector.broadcast %2 : f32 to vector<128x128xf32>
    %4 = arith.mulf %1, %3 : vector<128x128xf32>
    %c0_4 = arith.constant 0 : index
    %c0_5 = arith.constant 0 : index
    %c0_6 = arith.constant 0 : index
    %5 = vector.load %arg4[%c0_4, %c0_5, %c0_6] : memref<4x128x128xf32, #tpu.memory_space<vmem>>, vector<1x128x128xf32>
    %6 = vector.shape_cast %5 : vector<1x128x128xf32> to vector<128x128xf32>
    %c0_7 = arith.constant 0 : index
    %c0_8 = arith.constant 0 : index
    %7 = memref.load %arg3[%c0_7, %c0_8] : memref<2x4xf32, #tpu.memory_space<smem>>
    %8 = vector.broadcast %7 : f32 to vector<128x128xf32>
    %9 = arith.mulf %6, %8 : vector<128x128xf32>
    %c1 = arith.constant 1 : index
    %c0_9 = arith.constant 0 : index
    %c0_10 = arith.constant 0 : index
    %10 = vector.load %arg4[%c1, %c0_9, %c0_10] : memref<4x128x128xf32, #tpu.memory_space<vmem>>, vector<1x128x128xf32>
    %11 = vector.shape_cast %10 : vector<1x128x128xf32> to vector<128x128xf32>
    %c0_11 = arith.constant 0 : index
    %c1_12 = arith.constant 1 : index
    %12 = memref.load %arg2[%c0_11, %c1_12] : memref<2x4xf32, #tpu.memory_space<smem>>
    %13 = vector.broadcast %12 : f32 to vector<128x128xf32>
    %14 = arith.mulf %11, %13 : vector<128x128xf32>
    %15 = arith.addf %4, %14 : vector<128x128xf32>
    %c1_13 = arith.constant 1 : index
    %c0_14 = arith.constant 0 : index
    %c0_15 = arith.constant 0 : index
    %16 = vector.load %arg4[%c1_13, %c0_14, %c0_15] : memref<4x128x128xf32, #tpu.memory_space<vmem>>, vector<1x128x128xf32>
    %17 = vector.shape_cast %16 : vector<1x128x128xf32> to vector<128x128xf32>
    %c0_16 = arith.constant 0 : index
    %c1_17 = arith.constant 1 : index
    %18 = memref.load %arg3[%c0_16, %c1_17] : memref<2x4xf32, #tpu.memory_space<smem>>
    %19 = vector.broadcast %18 : f32 to vector<128x128xf32>
    %20 = arith.mulf %17, %19 : vector<128x128xf32>
    %21 = arith.addf %9, %20 : vector<128x128xf32>
    %c2 = arith.constant 2 : index
    %c0_18 = arith.constant 0 : index
    %c0_19 = arith.constant 0 : index
    %22 = vector.load %arg4[%c2, %c0_18, %c0_19] : memref<4x128x128xf32, #tpu.memory_space<vmem>>, vector<1x128x128xf32>
    %23 = vector.shape_cast %22 : vector<1x128x128xf32> to vector<128x128xf32>
    %c0_20 = arith.constant 0 : index
    %c2_21 = arith.constant 2 : index
    %24 = memref.load %arg2[%c0_20, %c2_21] : memref<2x4xf32, #tpu.memory_space<smem>>
    %25 = vector.broadcast %24 : f32 to vector<128x128xf32>
    %26 = arith.mulf %23, %25 : vector<128x128xf32>
    %27 = arith.addf %15, %26 : vector<128x128xf32>
    %c2_22 = arith.constant 2 : index
    %c0_23 = arith.constant 0 : index
    %c0_24 = arith.constant 0 : index
    %28 = vector.load %arg4[%c2_22, %c0_23, %c0_24] : memref<4x128x128xf32, #tpu.memory_space<vmem>>, vector<1x128x128xf32>
    %29 = vector.shape_cast %28 : vector<1x128x128xf32> to vector<128x128xf32>
    %c0_25 = arith.constant 0 : index
    %c2_26 = arith.constant 2 : index
    %30 = memref.load %arg3[%c0_25, %c2_26] : memref<2x4xf32, #tpu.memory_space<smem>>
    %31 = vector.broadcast %30 : f32 to vector<128x128xf32>
    %32 = arith.mulf %29, %31 : vector<128x128xf32>
    %33 = arith.addf %21, %32 : vector<128x128xf32>
    %c3 = arith.constant 3 : index
    %c0_27 = arith.constant 0 : index
    %c0_28 = arith.constant 0 : index
    %34 = vector.load %arg4[%c3, %c0_27, %c0_28] : memref<4x128x128xf32, #tpu.memory_space<vmem>>, vector<1x128x128xf32>
    %35 = vector.shape_cast %34 : vector<1x128x128xf32> to vector<128x128xf32>
    %c0_29 = arith.constant 0 : index
    %c3_30 = arith.constant 3 : index
    %36 = memref.load %arg2[%c0_29, %c3_30] : memref<2x4xf32, #tpu.memory_space<smem>>
    %37 = vector.broadcast %36 : f32 to vector<128x128xf32>
    %38 = arith.mulf %35, %37 : vector<128x128xf32>
    %39 = arith.addf %27, %38 : vector<128x128xf32>
    %c3_31 = arith.constant 3 : index
    %c0_32 = arith.constant 0 : index
    %c0_33 = arith.constant 0 : index
    %40 = vector.load %arg4[%c3_31, %c0_32, %c0_33] : memref<4x128x128xf32, #tpu.memory_space<vmem>>, vector<1x128x128xf32>
    %41 = vector.shape_cast %40 : vector<1x128x128xf32> to vector<128x128xf32>
    %c0_34 = arith.constant 0 : index
    %c3_35 = arith.constant 3 : index
    %42 = memref.load %arg3[%c0_34, %c3_35] : memref<2x4xf32, #tpu.memory_space<smem>>
    %43 = vector.broadcast %42 : f32 to vector<128x128xf32>
    %44 = arith.mulf %41, %43 : vector<128x128xf32>
    %45 = arith.addf %33, %44 : vector<128x128xf32>
    %46 = arith.truncf %39 : vector<128x128xf32> to vector<128x128xbf16>
    %c0_36 = arith.constant 0 : index
    %c0_37 = arith.constant 0 : index
    %c0_38 = arith.constant 0 : index
    %47 = vector.load %arg5[%c0_36, %c0_37, %c0_38] : memref<2x128x128xbf16, #tpu.memory_space<vmem>>, vector<1x128x128xbf16>
    %48 = vector.shape_cast %47 : vector<1x128x128xbf16> to vector<128x128xbf16>
    %49 = vector.shape_cast %46 : vector<128x128xbf16> to vector<1x128x128xbf16>
    tpu.vector_store %arg5[%c0_36, %c0_37, %c0_38], %49 {strides = array<i32>} : memref<2x128x128xbf16, #tpu.memory_space<vmem>>, vector<1x128x128xbf16>,
    %50 = arith.truncf %45 : vector<128x128xf32> to vector<128x128xbf16>
    %c0_39 = arith.constant 0 : index
    %c0_40 = arith.constant 0 : index
    %c0_41 = arith.constant 0 : index
    %51 = vector.load %arg6[%c0_39, %c0_40, %c0_41] : memref<2x128x128xbf16, #tpu.memory_space<vmem>>, vector<1x128x128xbf16>
    %52 = vector.shape_cast %51 : vector<1x128x128xbf16> to vector<128x128xbf16>
    %53 = vector.shape_cast %50 : vector<128x128xbf16> to vector<1x128x128xbf16>
    tpu.vector_store %arg6[%c0_39, %c0_40, %c0_41], %53 {strides = array<i32>} : memref<2x128x128xbf16, #tpu.memory_space<vmem>>, vector<1x128x128xbf16>,
    %c0_42 = arith.constant 0 : index
    %c0_43 = arith.constant 0 : index
    %c0_44 = arith.constant 0 : index
    %54 = vector.load %arg4[%c0_42, %c0_43, %c0_44] : memref<4x128x128xf32, #tpu.memory_space<vmem>>, vector<1x128x128xf32>
    %55 = vector.shape_cast %54 : vector<1x128x128xf32> to vector<128x128xf32>
    %c1_45 = arith.constant 1 : index
    %c0_46 = arith.constant 0 : index
    %56 = memref.load %arg2[%c1_45, %c0_46] : memref<2x4xf32, #tpu.memory_space<smem>>
    %57 = vector.broadcast %56 : f32 to vector<128x128xf32>
    %58 = arith.mulf %55, %57 : vector<128x128xf32>
    %c0_47 = arith.constant 0 : index
    %c0_48 = arith.constant 0 : index
    %c0_49 = arith.constant 0 : index
    %59 = vector.load %arg4[%c0_47, %c0_48, %c0_49] : memref<4x128x128xf32, #tpu.memory_space<vmem>>, vector<1x128x128xf32>
    %60 = vector.shape_cast %59 : vector<1x128x128xf32> to vector<128x128xf32>
    %c1_50 = arith.constant 1 : index
    %c0_51 = arith.constant 0 : index
    %61 = memref.load %arg3[%c1_50, %c0_51] : memref<2x4xf32, #tpu.memory_space<smem>>
    %62 = vector.broadcast %61 : f32 to vector<128x128xf32>
    %63 = arith.mulf %60, %62 : vector<128x128xf32>
    %c1_52 = arith.constant 1 : index
    %c0_53 = arith.constant 0 : index
    %c0_54 = arith.constant 0 : index
    %64 = vector.load %arg4[%c1_52, %c0_53, %c0_54] : memref<4x128x128xf32, #tpu.memory_space<vmem>>, vector<1x128x128xf32>
    %65 = vector.shape_cast %64 : vector<1x128x128xf32> to vector<128x128xf32>
    %c1_55 = arith.constant 1 : index
    %c1_56 = arith.constant 1 : index
    %66 = memref.load %arg2[%c1_55, %c1_56] : memref<2x4xf32, #tpu.memory_space<smem>>
    %67 = vector.broadcast %66 : f32 to vector<128x128xf32>
    %68 = arith.mulf %65, %67 : vector<128x128xf32>
    %69 = arith.addf %58, %68 : vector<128x128xf32>
    %c1_57 = arith.constant 1 : index
    %c0_58 = arith.constant 0 : index
    %c0_59 = arith.constant 0 : index
    %70 = vector.load %arg4[%c1_57, %c0_58, %c0_59] : memref<4x128x128xf32, #tpu.memory_space<vmem>>, vector<1x128x128xf32>
    %71 = vector.shape_cast %70 : vector<1x128x128xf32> to vector<128x128xf32>
    %c1_60 = arith.constant 1 : index
    %c1_61 = arith.constant 1 : index
    %72 = memref.load %arg3[%c1_60, %c1_61] : memref<2x4xf32, #tpu.memory_space<smem>>
    %73 = vector.broadcast %72 : f32 to vector<128x128xf32>
    %74 = arith.mulf %71, %73 : vector<128x128xf32>
    %75 = arith.addf %63, %74 : vector<128x128xf32>
    %c2_62 = arith.constant 2 : index
    %c0_63 = arith.constant 0 : index
    %c0_64 = arith.constant 0 : index
    %76 = vector.load %arg4[%c2_62, %c0_63, %c0_64] : memref<4x128x128xf32, #tpu.memory_space<vmem>>, vector<1x128x128xf32>
    %77 = vector.shape_cast %76 : vector<1x128x128xf32> to vector<128x128xf32>
    %c1_65 = arith.constant 1 : index
    %c2_66 = arith.constant 2 : index
    %78 = memref.load %arg2[%c1_65, %c2_66] : memref<2x4xf32, #tpu.memory_space<smem>>
    %79 = vector.broadcast %78 : f32 to vector<128x128xf32>
    %80 = arith.mulf %77, %79 : vector<128x128xf32>
    %81 = arith.addf %69, %80 : vector<128x128xf32>
    %c2_67 = arith.constant 2 : index
    %c0_68 = arith.constant 0 : index
    %c0_69 = arith.constant 0 : index
    %82 = vector.load %arg4[%c2_67, %c0_68, %c0_69] : memref<4x128x128xf32, #tpu.memory_space<vmem>>, vector<1x128x128xf32>
    %83 = vector.shape_cast %82 : vector<1x128x128xf32> to vector<128x128xf32>
    %c1_70 = arith.constant 1 : index
    %c2_71 = arith.constant 2 : index
    %84 = memref.load %arg3[%c1_70, %c2_71] : memref<2x4xf32, #tpu.memory_space<smem>>
    %85 = vector.broadcast %84 : f32 to vector<128x128xf32>
    %86 = arith.mulf %83, %85 : vector<128x128xf32>
    %87 = arith.addf %75, %86 : vector<128x128xf32>
    %c3_72 = arith.constant 3 : index
    %c0_73 = arith.constant 0 : index
    %c0_74 = arith.constant 0 : index
    %88 = vector.load %arg4[%c3_72, %c0_73, %c0_74] : memref<4x128x128xf32, #tpu.memory_space<vmem>>, vector<1x128x128xf32>
    %89 = vector.shape_cast %88 : vector<1x128x128xf32> to vector<128x128xf32>
    %c1_75 = arith.constant 1 : index
    %c3_76 = arith.constant 3 : index
    %90 = memref.load %arg2[%c1_75, %c3_76] : memref<2x4xf32, #tpu.memory_space<smem>>
    %91 = vector.broadcast %90 : f32 to vector<128x128xf32>
    %92 = arith.mulf %89, %91 : vector<128x128xf32>
    %93 = arith.addf %81, %92 : vector<128x128xf32>
    %c3_77 = arith.constant 3 : index
    %c0_78 = arith.constant 0 : index
    %c0_79 = arith.constant 0 : index
    %94 = vector.load %arg4[%c3_77, %c0_78, %c0_79] : memref<4x128x128xf32, #tpu.memory_space<vmem>>, vector<1x128x128xf32>
    %95 = vector.shape_cast %94 : vector<1x128x128xf32> to vector<128x128xf32>
    %c1_80 = arith.constant 1 : index
    %c3_81 = arith.constant 3 : index
    %96 = memref.load %arg3[%c1_80, %c3_81] : memref<2x4xf32, #tpu.memory_space<smem>>
    %97 = vector.broadcast %96 : f32 to vector<128x128xf32>
    %98 = arith.mulf %95, %97 : vector<128x128xf32>
    %99 = arith.addf %87, %98 : vector<128x128xf32>
    %100 = arith.truncf %93 : vector<128x128xf32> to vector<128x128xbf16>
    %c1_82 = arith.constant 1 : index
    %c0_83 = arith.constant 0 : index
    %c0_84 = arith.constant 0 : index
    %101 = vector.load %arg5[%c1_82, %c0_83, %c0_84] : memref<2x128x128xbf16, #tpu.memory_space<vmem>>, vector<1x128x128xbf16>
    %102 = vector.shape_cast %101 : vector<1x128x128xbf16> to vector<128x128xbf16>
    %103 = vector.shape_cast %100 : vector<128x128xbf16> to vector<1x128x128xbf16>
    tpu.vector_store %arg5[%c1_82, %c0_83, %c0_84], %103 {strides = array<i32>} : memref<2x128x128xbf16, #tpu.memory_space<vmem>>, vector<1x128x128xbf16>,
    %104 = arith.truncf %99 : vector<128x128xf32> to vector<128x128xbf16>
    %c1_85 = arith.constant 1 : index
    %c0_86 = arith.constant 0 : index
    %c0_87 = arith.constant 0 : index
    %105 = vector.load %arg6[%c1_85, %c0_86, %c0_87] : memref<2x128x128xbf16, #tpu.memory_space<vmem>>, vector<1x128x128xbf16>
    %106 = vector.shape_cast %105 : vector<1x128x128xbf16> to vector<128x128xbf16>
    %107 = vector.shape_cast %104 : vector<128x128xbf16> to vector<1x128x128xbf16>
    tpu.vector_store %arg6[%c1_85, %c0_86, %c0_87], %107 {strides = array<i32>} : memref<2x128x128xbf16, #tpu.memory_space<vmem>>, vector<1x128x128xbf16>,
    return
  }
  func.func @transform_0(%arg0: i32, %arg1: i32) -> (i32, i32) {
    %c0_i32 = arith.constant 0 : i32
    %c0_i32_0 = arith.constant 0 : i32
    %c0_i32_1 = arith.constant 0 : i32
    return %c0_i32, %c0_i32_0 : i32, i32
  }
  func.func @transform_1(%arg0: i32, %arg1: i32) -> (i32, i32) {
    %c0_i32 = arith.constant 0 : i32
    %c0_i32_0 = arith.constant 0 : i32
    %c0_i32_1 = arith.constant 0 : i32
    return %c0_i32, %c0_i32_0 : i32, i32
  }
  func.func @transform_2(%arg0: i32, %arg1: i32) -> (i32, i32, i32) {
    %c0_i32 = arith.constant 0 : i32
    %c0_i32_0 = arith.constant 0 : i32
    return %c0_i32, %arg0, %arg1 : i32, i32, i32
  }
  func.func @transform_3(%arg0: i32, %arg1: i32) -> (i32, i32, i32) {
    %c0_i32 = arith.constant 0 : i32
    %c0_i32_0 = arith.constant 0 : i32
    return %c0_i32, %arg0, %arg1 : i32, i32, i32
  }
  func.func @transform_4(%arg0: i32, %arg1: i32) -> (i32, i32, i32) {
    %c0_i32 = arith.constant 0 : i32
    %c0_i32_0 = arith.constant 0 : i32
    return %c0_i32, %arg0, %arg1 : i32, i32, i32
  }
}

</mosaic_0001>

<llo_original>
// kernel: tpu_custom_call.1
$region0: #{tpu_custom_call.1}
  #allocation0 [shape = 'u32[]', space=smem, size = 0x4, offset = 0x4, fixed_abs, tag = 'smem constant byte address 0x4 - core index']
  #allocation1 [shape = 'u32[144,128]{1,0:T(1,128)}', space=vmem, size = 0x12000, scoped, tag = 'internal scratch']
  %s0 = inlined_call_operand.hbm [shape: f32[2,4], index: 0, kind: input, shape index: {}]
  %s1 = inlined_call_operand.vmem [shape: f32[2,4], index: 1, kind: input, shape index: {}]
  %s2 = inlined_call_operand.hbm [shape: f32[4,128,128], index: 2, kind: input, shape index: {}]
  %s3 = inlined_call_operand.hbm [shape: bf16[2,128,128], index: 3, kind: output, shape index: {0}]
  %s4 = inlined_call_operand.hbm [shape: bf16[2,128,128], index: 4, kind: output, shape index: {1}]
  %5 = xla_tuple %s3, %s4
  %s6 = sld [smem:[#allocation0]]
  $region42: #{tpu_custom_call.1} parent=0
    _
  %s8 = ssub.s32 1, %s6
  %s9 = scalar_select 0, %s8, %s6
  $region1: #{tpu_custom_call.1} parent=0
    #allocation2 [shape = 'u8[1024]{0}', space=smem, size = 0x400, scoped, tag = 'input window, operand 0, single buffered']
    #allocation3 [shape = 's32[1]{0}', space=sflag, size = 0x4, scoped, tag = 'scoped memory for tpu_custom_call.1']
    #allocation4 [shape = 's32[1]{0}', space=sflag, size = 0x4, scoped, tag = 'scoped memory for tpu_custom_call.1']
    #allocation5 [shape = 's32[1]{0}', space=sflag, size = 0x4, scoped, tag = 'scoped memory for tpu_custom_call.1']
    #allocation6 [shape = 's32[1]{0}', space=sflag, size = 0x4, scoped, tag = 'scoped memory for tpu_custom_call.1']
    #allocation7 [shape = 'u8[1024]{0}', space=smem, size = 0x400, scoped, tag = 'input window, operand 1, single buffered']
    #allocation8 [shape = 'u8[262144]{0}', space=vmem, size = 0x40000, scoped, tag = 'input window, operand 2, single buffered']
    #allocation9 [shape = 'u8[65536]{0}', space=vmem, size = 0x10000, scoped, tag = 'output window, operand 0, single buffered']
    #allocation10 [shape = 'u8[65536]{0}', space=vmem, size = 0x10000, scoped, tag = 'output window, operand 1, single buffered']
    #allocation11 [shape = 's32[1]{0}', space=sflag, size = 0x4, scoped, tag = 'scoped memory for tpu_custom_call.1']
    %10 = vsyncpa [#allocation5], 0
    %11 = vsyncpa [#allocation6], 0
    %12 = vsyncpa [#allocation3], 0
    %13 = vsyncpa [#allocation4], 0
    %14 = vsyncpa [#allocation11], 0
    // Predicated region
    $region2: #{tpu_custom_call.1} parent=1 // pred_check
      _
    $region3: #{tpu_custom_call.1} parent=1 // pred_check_branch
      %16 = sbr.rel (0) target = $region5
    $region4: #{tpu_custom_call.1} parent=1 // pred_region
      %s18 = ssub.s32 32, 32
      %19 = vsyncadd [#allocation5], %s18
      %22 = dma.hbm_to_smem %s0, 32, [#allocation2], [#allocation5]
    $region5: #{tpu_custom_call.1} parent=1 // pred_fallthru
      _
    // Predicated region
    $region6: #{tpu_custom_call.1} parent=1 // pred_check
      _
    $region7: #{tpu_custom_call.1} parent=1 // pred_check_branch
      %24 = sbr.rel (0) target = $region9
    $region8: #{tpu_custom_call.1} parent=1 // pred_region
      %s26 = ssub.s32 32, 32
      %27 = vsyncadd [#allocation6], %s26
      %s29 = sshll.u32 %s1, 4
      %s30 = int_to_ptr.vmem [resolvable:$true] %s29
      %32 = dma.vmem_to_smem %s30, 32, [#allocation7], [#allocation6]
    $region9: #{tpu_custom_call.1} parent=1 // pred_fallthru
      _
    // Predicated region
    $region10: #{tpu_custom_call.1} parent=1 // pred_check
      _
    $region11: #{tpu_custom_call.1} parent=1 // pred_check_branch
      %34 = sbr.rel (0) target = $region13
    $region12: #{tpu_custom_call.1} parent=1 // pred_region
      %s36 = ssub.s32 8192, 8192
      %37 = vsyncadd [#allocation3], %s36
      %s38 = sshll.u32 [#allocation8], 4
      %s39 = int_to_ptr.vmem [resolvable:$true] %s38
      %44 = dma.hbm_to_vmem [thread:$0]  %s2, 8192, %s39, [#allocation3], 128, 128, 8
    $region13: #{tpu_custom_call.1} parent=1 // pred_fallthru
      _
    // Predicated region
    $region14: #{tpu_custom_call.1} parent=1 // pred_check
      _
    $region15: #{tpu_custom_call.1} parent=1 // pred_check_branch
      %46 = sbr.rel (0) target = $region17
    $region16: #{tpu_custom_call.1} parent=1 // pred_region
      %47 = dma.done [#allocation5], 32
    $region17: #{tpu_custom_call.1} parent=1 // pred_fallthru
      _
    // Predicated region
    $region18: #{tpu_custom_call.1} parent=1 // pred_check
      _
    $region19: #{tpu_custom_call.1} parent=1 // pred_check_branch
      %49 = sbr.rel (0) target = $region21
    $region20: #{tpu_custom_call.1} parent=1 // pred_region
      %50 = dma.done [#allocation6], 32
    $region21: #{tpu_custom_call.1} parent=1 // pred_fallthru
      _
    // Predicated region
    $region22: #{tpu_custom_call.1} parent=1 // pred_check
      _
    $region23: #{tpu_custom_call.1} parent=1 // pred_check_branch
      %52 = sbr.rel (0) target = $region25
    $region24: #{tpu_custom_call.1} parent=1 // pred_region
      %53 = dma.done [#allocation3], 8192
    $region25: #{tpu_custom_call.1} parent=1 // pred_fallthru
      _
    %54 = sfence
    %v55 = vld [vmem:[#allocation8] sm:$0xff]
    %v56 = vld [vmem:[#allocation8 + $0x8] sm:$0xff]
    %v57 = vld [vmem:[#allocation8 + $0x10] sm:$0xff]
    %v58 = vld [vmem:[#allocation8 + $0x18] sm:$0xff]
    %v59 = vld [vmem:[#allocation8 + $0x20] sm:$0xff]
    %v60 = vld [vmem:[#allocation8 + $0x28] sm:$0xff]
    %v61 = vld [vmem:[#allocation8 + $0x30] sm:$0xff]
    %v62 = vld [vmem:[#allocation8 + $0x38] sm:$0xff]
    %v63 = vld [vmem:[#allocation8 + $0x40] sm:$0xff]
    %v64 = vld [vmem:[#allocation8 + $0x48] sm:$0xff]
    %v65 = vld [vmem:[#allocation8 + $0x50] sm:$0xff]
    %v66 = vld [vmem:[#allocation8 + $0x58] sm:$0xff]
    %v67 = vld [vmem:[#allocation8 + $0x60] sm:$0xff]
    %v68 = vld [vmem:[#allocation8 + $0x68] sm:$0xff]
    %v69 = vld [vmem:[#allocation8 + $0x70] sm:$0xff]
    %v70 = vld [vmem:[#allocation8 + $0x78] sm:$0xff]
    %s71 = sld [smem:[#allocation2]]
    %v72 = vstv %s71
    %v73 = vmul.f32 %v55, %v72
    %v74 = vmul.f32 %v56, %v72
    %v75 = vmul.f32 %v57, %v72
    %v76 = vmul.f32 %v58, %v72
    %v77 = vmul.f32 %v59, %v72
    %v78 = vmul.f32 %v60, %v72
    %v79 = vmul.f32 %v61, %v72
    %v80 = vmul.f32 %v62, %v72
    %v81 = vmul.f32 %v63, %v72
    %v82 = vmul.f32 %v64, %v72
    %v83 = vmul.f32 %v65, %v72
    %v84 = vmul.f32 %v66, %v72
    %v85 = vmul.f32 %v67, %v72
    %v86 = vmul.f32 %v68, %v72
    %v87 = vmul.f32 %v69, %v72
    %v88 = vmul.f32 %v70, %v72
    %s89 = sld [smem:[#allocation7]]
    %v90 = vstv %s89
    %v91 = vmul.f32 %v55, %v90
    %v92 = vmul.f32 %v56, %v90
    %v93 = vmul.f32 %v57, %v90
    %v94 = vmul.f32 %v58, %v90
    %v95 = vmul.f32 %v59, %v90
    %v96 = vmul.f32 %v60, %v90
    %v97 = vmul.f32 %v61, %v90
    %v98 = vmul.f32 %v62, %v90
    %v99 = vmul.f32 %v63, %v90
    %v100 = vmul.f32 %v64, %v90
    %v101 = vmul.f32 %v65, %v90
    %v102 = vmul.f32 %v66, %v90
    %v103 = vmul.f32 %v67, %v90
    %v104 = vmul.f32 %v68, %v90
    %v105 = vmul.f32 %v69, %v90
    %v106 = vmul.f32 %v70, %v90
    %s107 = scalar_lea.vmem [#allocation8], 128
    %v108 = vld [vmem:[%s107] sm:$0xff]
    %v109 = vld [vmem:[%s107 + $0x8] sm:$0xff]
    %v110 = vld [vmem:[%s107 + $0x10] sm:$0xff]
    %v111 = vld [vmem:[%s107 + $0x18] sm:$0xff]
    %v112 = vld [vmem:[%s107 + $0x20] sm:$0xff]
    %v113 = vld [vmem:[%s107 + $0x28] sm:$0xff]
    %v114 = vld [vmem:[%s107 + $0x30] sm:$0xff]
    %v115 = vld [vmem:[%s107 + $0x38] sm:$0xff]
    %v116 = vld [vmem:[%s107 + $0x40] sm:$0xff]
    %v117 = vld [vmem:[%s107 + $0x48] sm:$0xff]
    %v118 = vld [vmem:[%s107 + $0x50] sm:$0xff]
    %v119 = vld [vmem:[%s107 + $0x58] sm:$0xff]
    %v120 = vld [vmem:[%s107 + $0x60] sm:$0xff]
    %v121 = vld [vmem:[%s107 + $0x68] sm:$0xff]
    %v122 = vld [vmem:[%s107 + $0x70] sm:$0xff]
    %v123 = vld [vmem:[%s107 + $0x78] sm:$0xff]
    %s124 = sld [smem:[#allocation2 + $0x1]]
    %v125 = vstv %s124
    %v126 = vmul.f32 %v108, %v125
    %v127 = vmul.f32 %v109, %v125
    %v128 = vmul.f32 %v110, %v125
    %v129 = vmul.f32 %v111, %v125
    %v130 = vmul.f32 %v112, %v125
    %v131 = vmul.f32 %v113, %v125
    %v132 = vmul.f32 %v114, %v125
    %v133 = vmul.f32 %v115, %v125
    %v134 = vmul.f32 %v116, %v125
    %v135 = vmul.f32 %v117, %v125
    %v136 = vmul.f32 %v118, %v125
    %v137 = vmul.f32 %v119, %v125
    %v138 = vmul.f32 %v120, %v125
    %v139 = vmul.f32 %v121, %v125
    %v140 = vmul.f32 %v122, %v125
    %v141 = vmul.f32 %v123, %v125
    %v142 = vadd.f32 %v73, %v126
    %v143 = vadd.f32 %v74, %v127
    %v144 = vadd.f32 %v75, %v128
    %v145 = vadd.f32 %v76, %v129
    %v146 = vadd.f32 %v77, %v130
    %v147 = vadd.f32 %v78, %v131
    %v148 = vadd.f32 %v79, %v132
    %v149 = vadd.f32 %v80, %v133
    %v150 = vadd.f32 %v81, %v134
    %v151 = vadd.f32 %v82, %v135
    %v152 = vadd.f32 %v83, %v136
    %v153 = vadd.f32 %v84, %v137
    %v154 = vadd.f32 %v85, %v138
    %v155 = vadd.f32 %v86, %v139
    %v156 = vadd.f32 %v87, %v140
    %v157 = vadd.f32 %v88, %v141
    %s158 = sld [smem:[#allocation7 + $0x1]]
    %v159 = vstv %s158
    %v160 = vmul.f32 %v108, %v159
    %v161 = vmul.f32 %v109, %v159
    %v162 = vmul.f32 %v110, %v159
    %v163 = vmul.f32 %v111, %v159
    %v164 = vmul.f32 %v112, %v159
    %v165 = vmul.f32 %v113, %v159
    %v166 = vmul.f32 %v114, %v159
    %v167 = vmul.f32 %v115, %v159
    %v168 = vmul.f32 %v116, %v159
    %v169 = vmul.f32 %v117, %v159
    %v170 = vmul.f32 %v118, %v159
    %v171 = vmul.f32 %v119, %v159
    %v172 = vmul.f32 %v120, %v159
    %v173 = vmul.f32 %v121, %v159
    %v174 = vmul.f32 %v122, %v159
    %v175 = vmul.f32 %v123, %v159
    %v176 = vadd.f32 %v91, %v160
    %v177 = vadd.f32 %v92, %v161
    %v178 = vadd.f32 %v93, %v162
    %v179 = vadd.f32 %v94, %v163
    %v180 = vadd.f32 %v95, %v164
    %v181 = vadd.f32 %v96, %v165
    %v182 = vadd.f32 %v97, %v166
    %v183 = vadd.f32 %v98, %v167
    %v184 = vadd.f32 %v99, %v168
    %v185 = vadd.f32 %v100, %v169
    %v186 = vadd.f32 %v101, %v170
    %v187 = vadd.f32 %v102, %v171
    %v188 = vadd.f32 %v103, %v172
    %v189 = vadd.f32 %v104, %v173
    %v190 = vadd.f32 %v105, %v174
    %v191 = vadd.f32 %v106, %v175
    %s192 = scalar_lea.vmem [#allocation8], 256
    %v193 = vld [vmem:[%s192] sm:$0xff]
    %v194 = vld [vmem:[%s192 + $0x8] sm:$0xff]
    %v195 = vld [vmem:[%s192 + $0x10] sm:$0xff]
    %v196 = vld [vmem:[%s192 + $0x18] sm:$0xff]
    %v197 = vld [vmem:[%s192 + $0x20] sm:$0xff]
    %v198 = vld [vmem:[%s192 + $0x28] sm:$0xff]
    %v199 = vld [vmem:[%s192 + $0x30] sm:$0xff]
    %v200 = vld [vmem:[%s192 + $0x38] sm:$0xff]
    %v201 = vld [vmem:[%s192 + $0x40] sm:$0xff]
    %v202 = vld [vmem:[%s192 + $0x48] sm:$0xff]
    %v203 = vld [vmem:[%s192 + $0x50] sm:$0xff]
    %v204 = vld [vmem:[%s192 + $0x58] sm:$0xff]
    %v205 = vld [vmem:[%s192 + $0x60] sm:$0xff]
    %v206 = vld [vmem:[%s192 + $0x68] sm:$0xff]
    %v207 = vld [vmem:[%s192 + $0x70] sm:$0xff]
    %v208 = vld [vmem:[%s192 + $0x78] sm:$0xff]
    %s209 = sld [smem:[#allocation2 + $0x2]]
    %v210 = vstv %s209
    %v211 = vmul.f32 %v193, %v210
    %v212 = vmul.f32 %v194, %v210
    %v213 = vmul.f32 %v195, %v210
    %v214 = vmul.f32 %v196, %v210
    %v215 = vmul.f32 %v197, %v210
    %v216 = vmul.f32 %v198, %v210
    %v217 = vmul.f32 %v199, %v210
    %v218 = vmul.f32 %v200, %v210
    %v219 = vmul.f32 %v201, %v210
    %v220 = vmul.f32 %v202, %v210
    %v221 = vmul.f32 %v203, %v210
    %v222 = vmul.f32 %v204, %v210
    %v223 = vmul.f32 %v205, %v210
    %v224 = vmul.f32 %v206, %v210
    %v225 = vmul.f32 %v207, %v210
    %v226 = vmul.f32 %v208, %v210
    %v227 = vadd.f32 %v142, %v211
    %v228 = vadd.f32 %v143, %v212
    %v229 = vadd.f32 %v144, %v213
    %v230 = vadd.f32 %v145, %v214
    %v231 = vadd.f32 %v146, %v215
    %v232 = vadd.f32 %v147, %v216
    %v233 = vadd.f32 %v148, %v217
    %v234 = vadd.f32 %v149, %v218
    %v235 = vadd.f32 %v150, %v219
    %v236 = vadd.f32 %v151, %v220
    %v237 = vadd.f32 %v152, %v221
    %v238 = vadd.f32 %v153, %v222
    %v239 = vadd.f32 %v154, %v223
    %v240 = vadd.f32 %v155, %v224
    %v241 = vadd.f32 %v156, %v225
    %v242 = vadd.f32 %v157, %v226
    %s243 = sld [smem:[#allocation7 + $0x2]]
    %v244 = vstv %s243
    %v245 = vmul.f32 %v193, %v244
    %v246 = vmul.f32 %v194, %v244
    %v247 = vmul.f32 %v195, %v244
    %v248 = vmul.f32 %v196, %v244
    %v249 = vmul.f32 %v197, %v244
    %v250 = vmul.f32 %v198, %v244
    %v251 = vmul.f32 %v199, %v244
    %v252 = vmul.f32 %v200, %v244
    %v253 = vmul.f32 %v201, %v244
    %v254 = vmul.f32 %v202, %v244
    %v255 = vmul.f32 %v203, %v244
    %v256 = vmul.f32 %v204, %v244
    %v257 = vmul.f32 %v205, %v244
    %v258 = vmul.f32 %v206, %v244
    %v259 = vmul.f32 %v207, %v244
    %v260 = vmul.f32 %v208, %v244
    %v261 = vadd.f32 %v176, %v245
    %v262 = vadd.f32 %v177, %v246
    %v263 = vadd.f32 %v178, %v247
    %v264 = vadd.f32 %v179, %v248
    %v265 = vadd.f32 %v180, %v249
    %v266 = vadd.f32 %v181, %v250
    %v267 = vadd.f32 %v182, %v251
    %v268 = vadd.f32 %v183, %v252
    %v269 = vadd.f32 %v184, %v253
    %v270 = vadd.f32 %v185, %v254
    %v271 = vadd.f32 %v186, %v255
    %v272 = vadd.f32 %v187, %v256
    %v273 = vadd.f32 %v188, %v257
    %v274 = vadd.f32 %v189, %v258
    %v275 = vadd.f32 %v190, %v259
    %v276 = vadd.f32 %v191, %v260
    %s277 = scalar_lea.vmem [#allocation8], 384
    %v278 = vld [vmem:[%s277] sm:$0xff]
    %v279 = vld [vmem:[%s277 + $0x8] sm:$0xff]
    %v280 = vld [vmem:[%s277 + $0x10] sm:$0xff]
    %v281 = vld [vmem:[%s277 + $0x18] sm:$0xff]
    %v282 = vld [vmem:[%s277 + $0x20] sm:$0xff]
    %v283 = vld [vmem:[%s277 + $0x28] sm:$0xff]
    %v284 = vld [vmem:[%s277 + $0x30] sm:$0xff]
    %v285 = vld [vmem:[%s277 + $0x38] sm:$0xff]
    %v286 = vld [vmem:[%s277 + $0x40] sm:$0xff]
    %v287 = vld [vmem:[%s277 + $0x48] sm:$0xff]
    %v288 = vld [vmem:[%s277 + $0x50] sm:$0xff]
    %v289 = vld [vmem:[%s277 + $0x58] sm:$0xff]
    %v290 = vld [vmem:[%s277 + $0x60] sm:$0xff]
    %v291 = vld [vmem:[%s277 + $0x68] sm:$0xff]
    %v292 = vld [vmem:[%s277 + $0x70] sm:$0xff]
    %v293 = vld [vmem:[%s277 + $0x78] sm:$0xff]
    %s294 = sld [smem:[#allocation2 + $0x3]]
    %v295 = vstv %s294
    %v296 = vmul.f32 %v278, %v295
    %v297 = vmul.f32 %v279, %v295
    %v298 = vmul.f32 %v280, %v295
    %v299 = vmul.f32 %v281, %v295
    %v300 = vmul.f32 %v282, %v295
    %v301 = vmul.f32 %v283, %v295
    %v302 = vmul.f32 %v284, %v295
    %v303 = vmul.f32 %v285, %v295
    %v304 = vmul.f32 %v286, %v295
    %v305 = vmul.f32 %v287, %v295
    %v306 = vmul.f32 %v288, %v295
    %v307 = vmul.f32 %v289, %v295
    %v308 = vmul.f32 %v290, %v295
    %v309 = vmul.f32 %v291, %v295
    %v310 = vmul.f32 %v292, %v295
    %v311 = vmul.f32 %v293, %v295
    %v312 = vadd.f32 %v227, %v296
    %v313 = vadd.f32 %v228, %v297
    %v314 = vadd.f32 %v229, %v298
    %v315 = vadd.f32 %v230, %v299
    %v316 = vadd.f32 %v231, %v300
    %v317 = vadd.f32 %v232, %v301
    %v318 = vadd.f32 %v233, %v302
    %v319 = vadd.f32 %v234, %v303
    %v320 = vadd.f32 %v235, %v304
    %v321 = vadd.f32 %v236, %v305
    %v322 = vadd.f32 %v237, %v306
    %v323 = vadd.f32 %v238, %v307
    %v324 = vadd.f32 %v239, %v308
    %v325 = vadd.f32 %v240, %v309
    %v326 = vadd.f32 %v241, %v310
    %v327 = vadd.f32 %v242, %v311
    %s328 = sld [smem:[#allocation7 + $0x3]]
    %v329 = vstv %s328
    %v330 = vmul.f32 %v278, %v329
    %v331 = vmul.f32 %v279, %v329
    %v332 = vmul.f32 %v280, %v329
    %v333 = vmul.f32 %v281, %v329
    %v334 = vmul.f32 %v282, %v329
    %v335 = vmul.f32 %v283, %v329
    %v336 = vmul.f32 %v284, %v329
    %v337 = vmul.f32 %v285, %v329
    %v338 = vmul.f32 %v286, %v329
    %v339 = vmul.f32 %v287, %v329
    %v340 = vmul.f32 %v288, %v329
    %v341 = vmul.f32 %v289, %v329
    %v342 = vmul.f32 %v290, %v329
    %v343 = vmul.f32 %v291, %v329
    %v344 = vmul.f32 %v292, %v329
    %v345 = vmul.f32 %v293, %v329
    %v346 = vadd.f32 %v261, %v330
    %v347 = vadd.f32 %v262, %v331
    %v348 = vadd.f32 %v263, %v332
    %v349 = vadd.f32 %v264, %v333
    %v350 = vadd.f32 %v265, %v334
    %v351 = vadd.f32 %v266, %v335
    %v352 = vadd.f32 %v267, %v336
    %v353 = vadd.f32 %v268, %v337
    %v354 = vadd.f32 %v269, %v338
    %v355 = vadd.f32 %v270, %v339
    %v356 = vadd.f32 %v271, %v340
    %v357 = vadd.f32 %v272, %v341
    %v358 = vadd.f32 %v273, %v342
    %v359 = vadd.f32 %v274, %v343
    %v360 = vadd.f32 %v275, %v344
    %v361 = vadd.f32 %v276, %v345
    %v362 = vpack.c.bf16 %v313, %v312
    %v363 = vpack.c.bf16 %v315, %v314
    %v364 = vpack.c.bf16 %v317, %v316
    %v365 = vpack.c.bf16 %v319, %v318
    %v366 = vpack.c.bf16 %v321, %v320
    %v367 = vpack.c.bf16 %v323, %v322
    %v368 = vpack.c.bf16 %v325, %v324
    %v369 = vpack.c.bf16 %v327, %v326
    %v378 = vunpack.c.l.b16 %v362
    %v379 = vunpack.c.h.b16 %v362
    %v380 = vunpack.c.l.b16 %v363
    %v381 = vunpack.c.h.b16 %v363
    %v382 = vunpack.c.l.b16 %v364
    %v383 = vunpack.c.h.b16 %v364
    %v384 = vunpack.c.l.b16 %v365
    %v385 = vunpack.c.h.b16 %v365
    %v386 = vunpack.c.l.b16 %v366
    %v387 = vunpack.c.h.b16 %v366
    %v388 = vunpack.c.l.b16 %v367
    %v389 = vunpack.c.h.b16 %v367
    %v390 = vunpack.c.l.b16 %v368
    %v391 = vunpack.c.h.b16 %v368
    %v392 = vunpack.c.l.b16 %v369
    %v393 = vunpack.c.h.b16 %v369
    %v394 = vpack.c.b16 %v378, %v378
    %v395 = vpack.c.b16 %v379, %v379
    %v396 = vpack.c.b16 %v380, %v380
    %v397 = vpack.c.b16 %v381, %v381
    %v398 = vpack.c.b16 %v382, %v382
    %v399 = vpack.c.b16 %v383, %v383
    %v400 = vpack.c.b16 %v384, %v384
    %v401 = vpack.c.b16 %v385, %v385
    %v402 = vpack.c.b16 %v386, %v386
    %v403 = vpack.c.b16 %v387, %v387
    %v404 = vpack.c.b16 %v388, %v388
    %v405 = vpack.c.b16 %v389, %v389
    %v406 = vpack.c.b16 %v390, %v390
    %v407 = vpack.c.b16 %v391, %v391
    %v408 = vpack.c.b16 %v392, %v392
    %v409 = vpack.c.b16 %v393, %v393
    %426 = vst [vmem:[#allocation9] sm:$0xf] %v394
    %427 = vst [vmem:[#allocation9 + $0x4] sm:$0xf] %v395
    %428 = vst [vmem:[#allocation9 + $0x8] sm:$0xf] %v396
    %429 = vst [vmem:[#allocation9 + $0xc] sm:$0xf] %v397
    %430 = vst [vmem:[#allocation9 + $0x10] sm:$0xf] %v398
    %431 = vst [vmem:[#allocation9 + $0x14] sm:$0xf] %v399
    %432 = vst [vmem:[#allocation9 + $0x18] sm:$0xf] %v400
    %433 = vst [vmem:[#allocation9 + $0x1c] sm:$0xf] %v401
    %434 = vst [vmem:[#allocation9 + $0x20] sm:$0xf] %v402
    %435 = vst [vmem:[#allocation9 + $0x24] sm:$0xf] %v403
    %436 = vst [vmem:[#allocation9 + $0x28] sm:$0xf] %v404
    %437 = vst [vmem:[#allocation9 + $0x2c] sm:$0xf] %v405
    %438 = vst [vmem:[#allocation9 + $0x30] sm:$0xf] %v406
    %439 = vst [vmem:[#allocation9 + $0x34] sm:$0xf] %v407
    %440 = vst [vmem:[#allocation9 + $0x38] sm:$0xf] %v408
    %441 = vst [vmem:[#allocation9 + $0x3c] sm:$0xf] %v409
    %v442 = vpack.c.bf16 %v347, %v346
    %v443 = vpack.c.bf16 %v349, %v348
    %v444 = vpack.c.bf16 %v351, %v350
    %v445 = vpack.c.bf16 %v353, %v352
    %v446 = vpack.c.bf16 %v355, %v354
    %v447 = vpack.c.bf16 %v357, %v356
    %v448 = vpack.c.bf16 %v359, %v358
    %v449 = vpack.c.bf16 %v361, %v360
    %v458 = vunpack.c.l.b16 %v442
    %v459 = vunpack.c.h.b16 %v442
    %v460 = vunpack.c.l.b16 %v443
    %v461 = vunpack.c.h.b16 %v443
    %v462 = vunpack.c.l.b16 %v444
    %v463 = vunpack.c.h.b16 %v444
    %v464 = vunpack.c.l.b16 %v445
    %v465 = vunpack.c.h.b16 %v445
    %v466 = vunpack.c.l.b16 %v446
    %v467 = vunpack.c.h.b16 %v446
    %v468 = vunpack.c.l.b16 %v447
    %v469 = vunpack.c.h.b16 %v447
    %v470 = vunpack.c.l.b16 %v448
    %v471 = vunpack.c.h.b16 %v448
    %v472 = vunpack.c.l.b16 %v449
    %v473 = vunpack.c.h.b16 %v449
    %v474 = vpack.c.b16 %v458, %v458
    %v475 = vpack.c.b16 %v459, %v459
    %v476 = vpack.c.b16 %v460, %v460
    %v477 = vpack.c.b16 %v461, %v461
    %v478 = vpack.c.b16 %v462, %v462
    %v479 = vpack.c.b16 %v463, %v463
    %v480 = vpack.c.b16 %v464, %v464
    %v481 = vpack.c.b16 %v465, %v465
    %v482 = vpack.c.b16 %v466, %v466
    %v483 = vpack.c.b16 %v467, %v467
    %v484 = vpack.c.b16 %v468, %v468
    %v485 = vpack.c.b16 %v469, %v469
    %v486 = vpack.c.b16 %v470, %v470
    %v487 = vpack.c.b16 %v471, %v471
    %v488 = vpack.c.b16 %v472, %v472
    %v489 = vpack.c.b16 %v473, %v473
    %506 = vst [vmem:[#allocation10] sm:$0xf] %v474
    %507 = vst [vmem:[#allocation10 + $0x4] sm:$0xf] %v475
    %508 = vst [vmem:[#allocation10 + $0x8] sm:$0xf] %v476
    %509 = vst [vmem:[#allocation10 + $0xc] sm:$0xf] %v477
    %510 = vst [vmem:[#allocation10 + $0x10] sm:$0xf] %v478
    %511 = vst [vmem:[#allocation10 + $0x14] sm:$0xf] %v479
    %512 = vst [vmem:[#allocation10 + $0x18] sm:$0xf] %v480
    %513 = vst [vmem:[#allocation10 + $0x1c] sm:$0xf] %v481
    %514 = vst [vmem:[#allocation10 + $0x20] sm:$0xf] %v482
    %515 = vst [vmem:[#allocation10 + $0x24] sm:$0xf] %v483
    %516 = vst [vmem:[#allocation10 + $0x28] sm:$0xf] %v484
    %517 = vst [vmem:[#allocation10 + $0x2c] sm:$0xf] %v485
    %518 = vst [vmem:[#allocation10 + $0x30] sm:$0xf] %v486
    %519 = vst [vmem:[#allocation10 + $0x34] sm:$0xf] %v487
    %520 = vst [vmem:[#allocation10 + $0x38] sm:$0xf] %v488
    %521 = vst [vmem:[#allocation10 + $0x3c] sm:$0xf] %v489
    %v522 = vld [vmem:[#allocation8] sm:$0xff]
    %v523 = vld [vmem:[#allocation8 + $0x8] sm:$0xff]
    %v524 = vld [vmem:[#allocation8 + $0x10] sm:$0xff]
    %v525 = vld [vmem:[#allocation8 + $0x18] sm:$0xff]
    %v526 = vld [vmem:[#allocation8 + $0x20] sm:$0xff]
    %v527 = vld [vmem:[#allocation8 + $0x28] sm:$0xff]
    %v528 = vld [vmem:[#allocation8 + $0x30] sm:$0xff]
    %v529 = vld [vmem:[#allocation8 + $0x38] sm:$0xff]
    %v530 = vld [vmem:[#allocation8 + $0x40] sm:$0xff]
    %v531 = vld [vmem:[#allocation8 + $0x48] sm:$0xff]
    %v532 = vld [vmem:[#allocation8 + $0x50] sm:$0xff]
    %v533 = vld [vmem:[#allocation8 + $0x58] sm:$0xff]
    %v534 = vld [vmem:[#allocation8 + $0x60] sm:$0xff]
    %v535 = vld [vmem:[#allocation8 + $0x68] sm:$0xff]
    %v536 = vld [vmem:[#allocation8 + $0x70] sm:$0xff]
    %v537 = vld [vmem:[#allocation8 + $0x78] sm:$0xff]
    %s538 = sld [smem:[#allocation2 + $0x80]]
    %v539 = vstv %s538
    %v540 = vmul.f32 %v522, %v539
    %v541 = vmul.f32 %v523, %v539
    %v542 = vmul.f32 %v524, %v539
    %v543 = vmul.f32 %v525, %v539
    %v544 = vmul.f32 %v526, %v539
    %v545 = vmul.f32 %v527, %v539
    %v546 = vmul.f32 %v528, %v539
    %v547 = vmul.f32 %v529, %v539
    %v548 = vmul.f32 %v530, %v539
    %v549 = vmul.f32 %v531, %v539
    %v550 = vmul.f32 %v532, %v539
    %v551 = vmul.f32 %v533, %v539
    %v552 = vmul.f32 %v534, %v539
    %v553 = vmul.f32 %v535, %v539
    %v554 = vmul.f32 %v536, %v539
    %v555 = vmul.f32 %v537, %v539
    %s556 = sld [smem:[#allocation7 + $0x80]]
    %v557 = vstv %s556
    %v558 = vmul.f32 %v522, %v557
    %v559 = vmul.f32 %v523, %v557
    %v560 = vmul.f32 %v524, %v557
    %v561 = vmul.f32 %v525, %v557
    %v562 = vmul.f32 %v526, %v557
    %v563 = vmul.f32 %v527, %v557
    %v564 = vmul.f32 %v528, %v557
    %v565 = vmul.f32 %v529, %v557
    %v566 = vmul.f32 %v530, %v557
    %v567 = vmul.f32 %v531, %v557
    %v568 = vmul.f32 %v532, %v557
    %v569 = vmul.f32 %v533, %v557
    %v570 = vmul.f32 %v534, %v557
    %v571 = vmul.f32 %v535, %v557
    %v572 = vmul.f32 %v536, %v557
    %v573 = vmul.f32 %v537, %v557
    %v574 = vld [vmem:[%s107] sm:$0xff]
    %v575 = vld [vmem:[%s107 + $0x8] sm:$0xff]
    %v576 = vld [vmem:[%s107 + $0x10] sm:$0xff]
    %v577 = vld [vmem:[%s107 + $0x18] sm:$0xff]
    %v578 = vld [vmem:[%s107 + $0x20] sm:$0xff]
    %v579 = vld [vmem:[%s107 + $0x28] sm:$0xff]
    %v580 = vld [vmem:[%s107 + $0x30] sm:$0xff]
    %v581 = vld [vmem:[%s107 + $0x38] sm:$0xff]
    %v582 = vld [vmem:[%s107 + $0x40] sm:$0xff]
    %v583 = vld [vmem:[%s107 + $0x48] sm:$0xff]
    %v584 = vld [vmem:[%s107 + $0x50] sm:$0xff]
    %v585 = vld [vmem:[%s107 + $0x58] sm:$0xff]
    %v586 = vld [vmem:[%s107 + $0x60] sm:$0xff]
    %v587 = vld [vmem:[%s107 + $0x68] sm:$0xff]
    %v588 = vld [vmem:[%s107 + $0x70] sm:$0xff]
    %v589 = vld [vmem:[%s107 + $0x78] sm:$0xff]
    %s590 = sld [smem:[#allocation2 + $0x81]]
    %v591 = vstv %s590
    %v592 = vmul.f32 %v574, %v591
    %v593 = vmul.f32 %v575, %v591
    %v594 = vmul.f32 %v576, %v591
    %v595 = vmul.f32 %v577, %v591
    %v596 = vmul.f32 %v578, %v591
    %v597 = vmul.f32 %v579, %v591
    %v598 = vmul.f32 %v580, %v591
    %v599 = vmul.f32 %v581, %v591
    %v600 = vmul.f32 %v582, %v591
    %v601 = vmul.f32 %v583, %v591
    %v602 = vmul.f32 %v584, %v591
    %v603 = vmul.f32 %v585, %v591
    %v604 = vmul.f32 %v586, %v591
    %v605 = vmul.f32 %v587, %v591
    %v606 = vmul.f32 %v588, %v591
    %v607 = vmul.f32 %v589, %v591
    %v608 = vadd.f32 %v540, %v592
    %v609 = vadd.f32 %v541, %v593
    %v610 = vadd.f32 %v542, %v594
    %v611 = vadd.f32 %v543, %v595
    %v612 = vadd.f32 %v544, %v596
    %v613 = vadd.f32 %v545, %v597
    %v614 = vadd.f32 %v546, %v598
    %v615 = vadd.f32 %v547, %v599
    %v616 = vadd.f32 %v548, %v600
    %v617 = vadd.f32 %v549, %v601
    %v618 = vadd.f32 %v550, %v602
    %v619 = vadd.f32 %v551, %v603
    %v620 = vadd.f32 %v552, %v604
    %v621 = vadd.f32 %v553, %v605
    %v622 = vadd.f32 %v554, %v606
    %v623 = vadd.f32 %v555, %v607
    %s624 = sld [smem:[#allocation7 + $0x81]]
    %v625 = vstv %s624
    %v626 = vmul.f32 %v574, %v625
    %v627 = vmul.f32 %v575, %v625
    %v628 = vmul.f32 %v576, %v625
    %v629 = vmul.f32 %v577, %v625
    %v630 = vmul.f32 %v578, %v625
    %v631 = vmul.f32 %v579, %v625
    %v632 = vmul.f32 %v580, %v625
    %v633 = vmul.f32 %v581, %v625
    %v634 = vmul.f32 %v582, %v625
    %v635 = vmul.f32 %v583, %v625
    %v636 = vmul.f32 %v584, %v625
    %v637 = vmul.f32 %v585, %v625
    %v638 = vmul.f32 %v586, %v625
    %v639 = vmul.f32 %v587, %v625
    %v640 = vmul.f32 %v588, %v625
    %v641 = vmul.f32 %v589, %v625
    %v642 = vadd.f32 %v558, %v626
    %v643 = vadd.f32 %v559, %v627
    %v644 = vadd.f32 %v560, %v628
    %v645 = vadd.f32 %v561, %v629
    %v646 = vadd.f32 %v562, %v630
    %v647 = vadd.f32 %v563, %v631
    %v648 = vadd.f32 %v564, %v632
    %v649 = vadd.f32 %v565, %v633
    %v650 = vadd.f32 %v566, %v634
    %v651 = vadd.f32 %v567, %v635
    %v652 = vadd.f32 %v568, %v636
    %v653 = vadd.f32 %v569, %v637
    %v654 = vadd.f32 %v570, %v638
    %v655 = vadd.f32 %v571, %v639
    %v656 = vadd.f32 %v572, %v640
    %v657 = vadd.f32 %v573, %v641
    %v658 = vld [vmem:[%s192] sm:$0xff]
    %v659 = vld [vmem:[%s192 + $0x8] sm:$0xff]
    %v660 = vld [vmem:[%s192 + $0x10] sm:$0xff]
    %v661 = vld [vmem:[%s192 + $0x18] sm:$0xff]
    %v662 = vld [vmem:[%s192 + $0x20] sm:$0xff]
    %v663 = vld [vmem:[%s192 + $0x28] sm:$0xff]
    %v664 = vld [vmem:[%s192 + $0x30] sm:$0xff]
    %v665 = vld [vmem:[%s192 + $0x38] sm:$0xff]
    %v666 = vld [vmem:[%s192 + $0x40] sm:$0xff]
    %v667 = vld [vmem:[%s192 + $0x48] sm:$0xff]
    %v668 = vld [vmem:[%s192 + $0x50] sm:$0xff]
    %v669 = vld [vmem:[%s192 + $0x58] sm:$0xff]
    %v670 = vld [vmem:[%s192 + $0x60] sm:$0xff]
    %v671 = vld [vmem:[%s192 + $0x68] sm:$0xff]
    %v672 = vld [vmem:[%s192 + $0x70] sm:$0xff]
    %v673 = vld [vmem:[%s192 + $0x78] sm:$0xff]
    %s674 = sld [smem:[#allocation2 + $0x82]]
    %v675 = vstv %s674
    %v676 = vmul.f32 %v658, %v675
    %v677 = vmul.f32 %v659, %v675
    %v678 = vmul.f32 %v660, %v675
    %v679 = vmul.f32 %v661, %v675
    %v680 = vmul.f32 %v662, %v675
    %v681 = vmul.f32 %v663, %v675
    %v682 = vmul.f32 %v664, %v675
    %v683 = vmul.f32 %v665, %v675
    %v684 = vmul.f32 %v666, %v675
    %v685 = vmul.f32 %v667, %v675
    %v686 = vmul.f32 %v668, %v675
    %v687 = vmul.f32 %v669, %v675
    %v688 = vmul.f32 %v670, %v675
    %v689 = vmul.f32 %v671, %v675
    %v690 = vmul.f32 %v672, %v675
    %v691 = vmul.f32 %v673, %v675
    %v692 = vadd.f32 %v608, %v676
    %v693 = vadd.f32 %v609, %v677
    %v694 = vadd.f32 %v610, %v678
    %v695 = vadd.f32 %v611, %v679
    %v696 = vadd.f32 %v612, %v680
    %v697 = vadd.f32 %v613, %v681
    %v698 = vadd.f32 %v614, %v682
    %v699 = vadd.f32 %v615, %v683
    %v700 = vadd.f32 %v616, %v684
    %v701 = vadd.f32 %v617, %v685
    %v702 = vadd.f32 %v618, %v686
    %v703 = vadd.f32 %v619, %v687
    %v704 = vadd.f32 %v620, %v688
    %v705 = vadd.f32 %v621, %v689
    %v706 = vadd.f32 %v622, %v690
    %v707 = vadd.f32 %v623, %v691
    %s708 = sld [smem:[#allocation7 + $0x82]]
    %v709 = vstv %s708
    %v710 = vmul.f32 %v658, %v709
    %v711 = vmul.f32 %v659, %v709
    %v712 = vmul.f32 %v660, %v709
    %v713 = vmul.f32 %v661, %v709
    %v714 = vmul.f32 %v662, %v709
    %v715 = vmul.f32 %v663, %v709
    %v716 = vmul.f32 %v664, %v709
    %v717 = vmul.f32 %v665, %v709
    %v718 = vmul.f32 %v666, %v709
    %v719 = vmul.f32 %v667, %v709
    %v720 = vmul.f32 %v668, %v709
    %v721 = vmul.f32 %v669, %v709
    %v722 = vmul.f32 %v670, %v709
    %v723 = vmul.f32 %v671, %v709
    %v724 = vmul.f32 %v672, %v709
    %v725 = vmul.f32 %v673, %v709
    %v726 = vadd.f32 %v642, %v710
    %v727 = vadd.f32 %v643, %v711
    %v728 = vadd.f32 %v644, %v712
    %v729 = vadd.f32 %v645, %v713
    %v730 = vadd.f32 %v646, %v714
    %v731 = vadd.f32 %v647, %v715
    %v732 = vadd.f32 %v648, %v716
    %v733 = vadd.f32 %v649, %v717
    %v734 = vadd.f32 %v650, %v718
    %v735 = vadd.f32 %v651, %v719
    %v736 = vadd.f32 %v652, %v720
    %v737 = vadd.f32 %v653, %v721
    %v738 = vadd.f32 %v654, %v722
    %v739 = vadd.f32 %v655, %v723
    %v740 = vadd.f32 %v656, %v724
    %v741 = vadd.f32 %v657, %v725
    %v742 = vld [vmem:[%s277] sm:$0xff]
    %v743 = vld [vmem:[%s277 + $0x8] sm:$0xff]
    %v744 = vld [vmem:[%s277 + $0x10] sm:$0xff]
    %v745 = vld [vmem:[%s277 + $0x18] sm:$0xff]
    %v746 = vld [vmem:[%s277 + $0x20] sm:$0xff]
    %v747 = vld [vmem:[%s277 + $0x28] sm:$0xff]
    %v748 = vld [vmem:[%s277 + $0x30] sm:$0xff]
    %v749 = vld [vmem:[%s277 + $0x38] sm:$0xff]
    %v750 = vld [vmem:[%s277 + $0x40] sm:$0xff]
    %v751 = vld [vmem:[%s277 + $0x48] sm:$0xff]
    %v752 = vld [vmem:[%s277 + $0x50] sm:$0xff]
    %v753 = vld [vmem:[%s277 + $0x58] sm:$0xff]
    %v754 = vld [vmem:[%s277 + $0x60] sm:$0xff]
    %v755 = vld [vmem:[%s277 + $0x68] sm:$0xff]
    %v756 = vld [vmem:[%s277 + $0x70] sm:$0xff]
    %v757 = vld [vmem:[%s277 + $0x78] sm:$0xff]
    %s758 = sld [smem:[#allocation2 + $0x83]]
    %v759 = vstv %s758
    %v760 = vmul.f32 %v742, %v759
    %v761 = vmul.f32 %v743, %v759
    %v762 = vmul.f32 %v744, %v759
    %v763 = vmul.f32 %v745, %v759
    %v764 = vmul.f32 %v746, %v759
    %v765 = vmul.f32 %v747, %v759
    %v766 = vmul.f32 %v748, %v759
    %v767 = vmul.f32 %v749, %v759
    %v768 = vmul.f32 %v750, %v759
    %v769 = vmul.f32 %v751, %v759
    %v770 = vmul.f32 %v752, %v759
    %v771 = vmul.f32 %v753, %v759
    %v772 = vmul.f32 %v754, %v759
    %v773 = vmul.f32 %v755, %v759
    %v774 = vmul.f32 %v756, %v759
    %v775 = vmul.f32 %v757, %v759
    %v776 = vadd.f32 %v692, %v760
    %v777 = vadd.f32 %v693, %v761
    %v778 = vadd.f32 %v694, %v762
    %v779 = vadd.f32 %v695, %v763
    %v780 = vadd.f32 %v696, %v764
    %v781 = vadd.f32 %v697, %v765
    %v782 = vadd.f32 %v698, %v766
    %v783 = vadd.f32 %v699, %v767
    %v784 = vadd.f32 %v700, %v768
    %v785 = vadd.f32 %v701, %v769
    %v786 = vadd.f32 %v702, %v770
    %v787 = vadd.f32 %v703, %v771
    %v788 = vadd.f32 %v704, %v772
    %v789 = vadd.f32 %v705, %v773
    %v790 = vadd.f32 %v706, %v774
    %v791 = vadd.f32 %v707, %v775
    %s792 = sld [smem:[#allocation7 + $0x83]]
    %v793 = vstv %s792
    %v794 = vmul.f32 %v742, %v793
    %v795 = vmul.f32 %v743, %v793
    %v796 = vmul.f32 %v744, %v793
    %v797 = vmul.f32 %v745, %v793
    %v798 = vmul.f32 %v746, %v793
    %v799 = vmul.f32 %v747, %v793
    %v800 = vmul.f32 %v748, %v793
    %v801 = vmul.f32 %v749, %v793
    %v802 = vmul.f32 %v750, %v793
    %v803 = vmul.f32 %v751, %v793
    %v804 = vmul.f32 %v752, %v793
    %v805 = vmul.f32 %v753, %v793
    %v806 = vmul.f32 %v754, %v793
    %v807 = vmul.f32 %v755, %v793
    %v808 = vmul.f32 %v756, %v793
    %v809 = vmul.f32 %v757, %v793
    %v810 = vadd.f32 %v726, %v794
    %v811 = vadd.f32 %v727, %v795
    %v812 = vadd.f32 %v728, %v796
    %v813 = vadd.f32 %v729, %v797
    %v814 = vadd.f32 %v730, %v798
    %v815 = vadd.f32 %v731, %v799
    %v816 = vadd.f32 %v732, %v800
    %v817 = vadd.f32 %v733, %v801
    %v818 = vadd.f32 %v734, %v802
    %v819 = vadd.f32 %v735, %v803
    %v820 = vadd.f32 %v736, %v804
    %v821 = vadd.f32 %v737, %v805
    %v822 = vadd.f32 %v738, %v806
    %v823 = vadd.f32 %v739, %v807
    %v824 = vadd.f32 %v740, %v808
    %v825 = vadd.f32 %v741, %v809
    %v826 = vpack.c.bf16 %v777, %v776
    %v827 = vpack.c.bf16 %v779, %v778
    %v828 = vpack.c.bf16 %v781, %v780
    %v829 = vpack.c.bf16 %v783, %v782
    %v830 = vpack.c.bf16 %v785, %v784
    %v831 = vpack.c.bf16 %v787, %v786
    %v832 = vpack.c.bf16 %v789, %v788
    %v833 = vpack.c.bf16 %v791, %v790
    %v842 = vunpack.c.l.b16 %v826
    %v843 = vunpack.c.h.b16 %v826
    %v844 = vunpack.c.l.b16 %v827
    %v845 = vunpack.c.h.b16 %v827
    %v846 = vunpack.c.l.b16 %v828
    %v847 = vunpack.c.h.b16 %v828
    %v848 = vunpack.c.l.b16 %v829
    %v849 = vunpack.c.h.b16 %v829
    %v850 = vunpack.c.l.b16 %v830
    %v851 = vunpack.c.h.b16 %v830
    %v852 = vunpack.c.l.b16 %v831
    %v853 = vunpack.c.h.b16 %v831
    %v854 = vunpack.c.l.b16 %v832
    %v855 = vunpack.c.h.b16 %v832
    %v856 = vunpack.c.l.b16 %v833
    %v857 = vunpack.c.h.b16 %v833
    %v858 = vpack.c.b16 %v842, %v842
    %v859 = vpack.c.b16 %v843, %v843
    %v860 = vpack.c.b16 %v844, %v844
    %v861 = vpack.c.b16 %v845, %v845
    %v862 = vpack.c.b16 %v846, %v846
    %v863 = vpack.c.b16 %v847, %v847
    %v864 = vpack.c.b16 %v848, %v848
    %v865 = vpack.c.b16 %v849, %v849
    %v866 = vpack.c.b16 %v850, %v850
    %v867 = vpack.c.b16 %v851, %v851
    %v868 = vpack.c.b16 %v852, %v852
    %v869 = vpack.c.b16 %v853, %v853
    %v870 = vpack.c.b16 %v854, %v854
    %v871 = vpack.c.b16 %v855, %v855
    %v872 = vpack.c.b16 %v856, %v856
    %v873 = vpack.c.b16 %v857, %v857
    %s890 = scalar_lea.vmem [#allocation9], 64
    %891 = vst [vmem:[%s890] sm:$0xf] %v858
    %892 = vst [vmem:[%s890 + $0x4] sm:$0xf] %v859
    %893 = vst [vmem:[%s890 + $0x8] sm:$0xf] %v860
    %894 = vst [vmem:[%s890 + $0xc] sm:$0xf] %v861
    %895 = vst [vmem:[%s890 + $0x10] sm:$0xf] %v862
    %896 = vst [vmem:[%s890 + $0x14] sm:$0xf] %v863
    %897 = vst [vmem:[%s890 + $0x18] sm:$0xf] %v864
    %898 = vst [vmem:[%s890 + $0x1c] sm:$0xf] %v865
    %899 = vst [vmem:[%s890 + $0x20] sm:$0xf] %v866
    %900 = vst [vmem:[%s890 + $0x24] sm:$0xf] %v867
    %901 = vst [vmem:[%s890 + $0x28] sm:$0xf] %v868
    %902 = vst [vmem:[%s890 + $0x2c] sm:$0xf] %v869
    %903 = vst [vmem:[%s890 + $0x30] sm:$0xf] %v870
    %904 = vst [vmem:[%s890 + $0x34] sm:$0xf] %v871
    %905 = vst [vmem:[%s890 + $0x38] sm:$0xf] %v872
    %906 = vst [vmem:[%s890 + $0x3c] sm:$0xf] %v873
    %v907 = vpack.c.bf16 %v811, %v810
    %v908 = vpack.c.bf16 %v813, %v812
    %v909 = vpack.c.bf16 %v815, %v814
    %v910 = vpack.c.bf16 %v817, %v816
    %v911 = vpack.c.bf16 %v819, %v818
    %v912 = vpack.c.bf16 %v821, %v820
    %v913 = vpack.c.bf16 %v823, %v822
    %v914 = vpack.c.bf16 %v825, %v824
    %v923 = vunpack.c.l.b16 %v907
    %v924 = vunpack.c.h.b16 %v907
    %v925 = vunpack.c.l.b16 %v908
    %v926 = vunpack.c.h.b16 %v908
    %v927 = vunpack.c.l.b16 %v909
    %v928 = vunpack.c.h.b16 %v909
    %v929 = vunpack.c.l.b16 %v910
    %v930 = vunpack.c.h.b16 %v910
    %v931 = vunpack.c.l.b16 %v911
    %v932 = vunpack.c.h.b16 %v911
    %v933 = vunpack.c.l.b16 %v912
    %v934 = vunpack.c.h.b16 %v912
    %v935 = vunpack.c.l.b16 %v913
    %v936 = vunpack.c.h.b16 %v913
    %v937 = vunpack.c.l.b16 %v914
    %v938 = vunpack.c.h.b16 %v914
    %v939 = vpack.c.b16 %v923, %v923
    %v940 = vpack.c.b16 %v924, %v924
    %v941 = vpack.c.b16 %v925, %v925
    %v942 = vpack.c.b16 %v926, %v926
    %v943 = vpack.c.b16 %v927, %v927
    %v944 = vpack.c.b16 %v928, %v928
    %v945 = vpack.c.b16 %v929, %v929
    %v946 = vpack.c.b16 %v930, %v930
    %v947 = vpack.c.b16 %v931, %v931
    %v948 = vpack.c.b16 %v932, %v932
    %v949 = vpack.c.b16 %v933, %v933
    %v950 = vpack.c.b16 %v934, %v934
    %v951 = vpack.c.b16 %v935, %v935
    %v952 = vpack.c.b16 %v936, %v936
    %v953 = vpack.c.b16 %v937, %v937
    %v954 = vpack.c.b16 %v938, %v938
    %s971 = scalar_lea.vmem [#allocation10], 64
    %972 = vst [vmem:[%s971] sm:$0xf] %v939
    %973 = vst [vmem:[%s971 + $0x4] sm:$0xf] %v940
    %974 = vst [vmem:[%s971 + $0x8] sm:$0xf] %v941
    %975 = vst [vmem:[%s971 + $0xc] sm:$0xf] %v942
    %976 = vst [vmem:[%s971 + $0x10] sm:$0xf] %v943
    %977 = vst [vmem:[%s971 + $0x14] sm:$0xf] %v944
    %978 = vst [vmem:[%s971 + $0x18] sm:$0xf] %v945
    %979 = vst [vmem:[%s971 + $0x1c] sm:$0xf] %v946
    %980 = vst [vmem:[%s971 + $0x20] sm:$0xf] %v947
    %981 = vst [vmem:[%s971 + $0x24] sm:$0xf] %v948
    %982 = vst [vmem:[%s971 + $0x28] sm:$0xf] %v949
    %983 = vst [vmem:[%s971 + $0x2c] sm:$0xf] %v950
    %984 = vst [vmem:[%s971 + $0x30] sm:$0xf] %v951
    %985 = vst [vmem:[%s971 + $0x34] sm:$0xf] %v952
    %986 = vst [vmem:[%s971 + $0x38] sm:$0xf] %v953
    %987 = vst [vmem:[%s971 + $0x3c] sm:$0xf] %v954
    // Predicated region
    $region26: #{tpu_custom_call.1} parent=1 // pred_check
      _
    $region27: #{tpu_custom_call.1} parent=1 // pred_check_branch
      %989 = sbr.rel (0) target = $region29
    $region28: #{tpu_custom_call.1} parent=1 // pred_region
      %s991 = ssub.s32 2048, 2048
      %992 = vsyncadd [#allocation4], %s991
      %s993 = sshll.u32 [#allocation9], 4
      %s994 = int_to_ptr.vmem [resolvable:$true] %s993
      %999 = dma.vmem_to_hbm [thread:$0]  %s994, 2048, %s3, [#allocation4], 64, 64, 4
    $region29: #{tpu_custom_call.1} parent=1 // pred_fallthru
      _
    // Predicated region
    $region30: #{tpu_custom_call.1} parent=1 // pred_check
      _
    $region31: #{tpu_custom_call.1} parent=1 // pred_check_branch
      %1001 = sbr.rel (0) target = $region33
    $region32: #{tpu_custom_call.1} parent=1 // pred_region
      %s1003 = ssub.s32 2048, 2048
      %1004 = vsyncadd [#allocation11], %s1003
      %s1005 = sshll.u32 [#allocation10], 4
      %s1006 = int_to_ptr.vmem [resolvable:$true] %s1005
      %1011 = dma.vmem_to_hbm [thread:$0]  %s1006, 2048, %s4, [#allocation11], 64, 64, 4
    $region33: #{tpu_custom_call.1} parent=1 // pred_fallthru
      _
    // Predicated region
    $region34: #{tpu_custom_call.1} parent=1 // pred_check
      _
    $region35: #{tpu_custom_call.1} parent=1 // pred_check_branch
      %1013 = sbr.rel (0) target = $region37
    $region36: #{tpu_custom_call.1} parent=1 // pred_region
      %1014 = dma.done [#allocation4], 2048
    $region37: #{tpu_custom_call.1} parent=1 // pred_fallthru
      _
    // Predicated region
    $region38: #{tpu_custom_call.1} parent=1 // pred_check
      _
    $region39: #{tpu_custom_call.1} parent=1 // pred_check_branch
      %1016 = sbr.rel (0) target = $region41
    $region40: #{tpu_custom_call.1} parent=1 // pred_region
      %1017 = dma.done [#allocation11], 2048
    $region41: #{tpu_custom_call.1} parent=1 // pred_fallthru
      _
    %1018 = vsyncpa [#allocation3], 1
    %1019 = vsyncpa [#allocation4], 1
    %1020 = vsyncpa [#allocation11], 1
    %1021 = vsyncpa [#allocation5], 1
    %1022 = vsyncpa [#allocation6], 1

</llo_original>
